<compile_context>
chip_gen: v5e
topology: v5e:2x2
jax: 0.10.0
libtpu: 0.0.40
codegen_flags: <defaults>
</compile_context>

<pallas_src>
import jax
import jax.numpy as jnp
from jax.experimental import pallas as pl
from jax.experimental.pallas import tpu as pltpu

_NTH = 10      # Taylor expansion order (matches the PyTorch reference)
_LANES = 128   # batch elements per lane row


def _taylor_coeffs():
    """Signed reciprocal-denominator coefficients for taylor_A/B/C."""
    cA, cB, cC = [], [], []
    dA = dB = dC = 1.0
    for i in range(_NTH + 1):
        if i > 0:
            dA *= 2 * i * (2 * i + 1)
        dB *= (2 * i + 1) * (2 * i + 2)
        dC *= (2 * i + 2) * (2 * i + 3)
        s = (-1.0) ** i
        cA.append(s / dA)
        cB.append(s / dB)
        cC.append(s / dC)
    return cA, cB, cC


_CA, _CB, _CC = _taylor_coeffs()


def refine_pose_kernel(wu_ref, prior_ref, out_ref):
    # Dense [TILE_M, 128] component tiles.
    w0 = wu_ref[0]
    w1 = wu_ref[1]
    w2 = wu_ref[2]
    u0 = wu_ref[3]
    u1 = wu_ref[4]
    u2 = wu_ref[5]

    # theta^2 (the Taylor series only uses even powers of theta).
    w00 = w0 * w0
    w11 = w1 * w1
    w22 = w2 * w2
    t2 = w00 + w11 + w22

    # Horner evaluation of the three degree-NTH polynomials in theta^2.
    A = _CA[_NTH]
    B = _CB[_NTH]
    C = _CC[_NTH]
    for i in range(_NTH - 1, -1, -1):
        A = A * t2 + _CA[i]
        B = B * t2 + _CB[i]
        C = C * t2 + _CC[i]

    # Closed-form skew(w)^2 entries (no dead multiplies against zeros).
    w01 = w0 * w1
    w02 = w0 * w2
    w12 = w1 * w2
    s00 = -(w11 + w22)
    s11 = -(w00 + w22)
    s22 = -(w00 + w11)

    # R_a = I + A*wx + B*wx^2
    Aw0 = A * w0
    Aw1 = A * w1
    Aw2 = A * w2
    B01 = B * w01
    B02 = B * w02
    B12 = B * w12
    Ra00 = 1.0 + B * s00
    Ra01 = B01 - Aw2
    Ra02 = B02 + Aw1
    Ra10 = B01 + Aw2
    Ra11 = 1.0 + B * s11
    Ra12 = B12 - Aw0
    Ra20 = B02 - Aw1
    Ra21 = B12 + Aw0
    Ra22 = 1.0 + B * s22

    # V = I + B*wx + C*wx^2
    Bw0 = B * w0
    Bw1 = B * w1
    Bw2 = B * w2
    C01 = C * w01
    C02 = C * w02
    C12 = C * w12
    V00 = 1.0 + C * s00
    V01 = C01 - Bw2
    V02 = C02 + Bw1
    V10 = C01 + Bw2
    V11 = 1.0 + C * s11
    V12 = C12 - Bw0
    V20 = C02 - Bw1
    V21 = C12 + Bw0
    V22 = 1.0 + C * s22

    # t_a = V @ u
    ta0 = V00 * u0 + V01 * u1 + V02 * u2
    ta1 = V10 * u0 + V11 * u1 + V12 * u2
    ta2 = V20 * u0 + V21 * u1 + V22 * u2

    R_a = ((Ra00, Ra01, Ra02), (Ra10, Ra11, Ra12), (Ra20, Ra21, Ra22))
    t_a = (ta0, ta1, ta2)

    # compose_pair with the prior: R_new = R_b @ R_a ; t_new = R_b @ t_a + t_b.
    # Written directly as 12 dense, unmasked per-row stores (no concatenate).
    for i in range(3):
        rb0 = prior_ref[i * 4 + 0]
        rb1 = prior_ref[i * 4 + 1]
        rb2 = prior_ref[i * 4 + 2]
        tb = prior_ref[i * 4 + 3]
        for j in range(3):
            out_ref[i * 4 + j] = (
                rb0 * R_a[0][j] + rb1 * R_a[1][j] + rb2 * R_a[2][j]
            )
        out_ref[i * 4 + 3] = rb0 * t_a[0] + rb1 * t_a[1] + rb2 * t_a[2] + tb


def _refine_pose_cm(wu_cm, prior_cm, tile_m):
    """Component-major entry point: wu_cm [6, M, 128], prior_cm [12, M, 128]."""
    _, M, L = wu_cm.shape
    assert L == _LANES and M % tile_m == 0
    return pl.pallas_call(
        refine_pose_kernel,
        out_shape=jax.ShapeDtypeStruct((12, M, _LANES), jnp.float32),
        grid_spec=pltpu.PrefetchScalarGridSpec(
            num_scalar_prefetch=0,
            grid=(M // tile_m,),
            in_specs=[
                pl.BlockSpec((6, tile_m, _LANES), lambda i: (0, i, 0)),
                pl.BlockSpec((12, tile_m, _LANES), lambda i: (0, i, 0)),
            ],
            out_specs=pl.BlockSpec((12, tile_m, _LANES), lambda i: (0, i, 0)),
        ),
        compiler_params=pltpu.CompilerParams(
            dimension_semantics=("parallel",),
        ),
    )(wu_cm, prior_cm)


def refine_pose(refine_pose_se3, prior_pose, *, tile_m_max=64):
    """refine_pose_se3: [N, 6] f32, prior_pose: [N, 3, 4] f32 -> [N, 3, 4] f32.

    The layout transposes below exist only to interface with the row-major
    [N, 6]/[N, 3, 4] spec; callers that can keep data component-major should
    use `_refine_pose_cm` directly and skip them.
    """
    N = refine_pose_se3.shape[0]
    m_needed = -(-N // _LANES)                     # ceil(N / 128)
    if m_needed <= tile_m_max:
        tile_m = max(m_needed, 1)                  # one block covering all of M
    else:
        assert tile_m_max % 8 == 0, "tile_m_max must be a multiple of 8"
        tile_m = tile_m_max
    M = -(-max(m_needed, 1) // tile_m) * tile_m
    N_pad = M * _LANES

    wu = jnp.asarray(refine_pose_se3, jnp.float32)
    prior = jnp.asarray(prior_pose, jnp.float32).reshape(N, 12)
    if N_pad != N:
        wu = jnp.pad(wu, ((0, N_pad - N), (0, 0)))
        prior = jnp.pad(prior, ((0, N_pad - N), (0, 0)))

    # TODO(synk): keep pose data component-major upstream/downstream so these
    # XLA-side transposes (extra HBM passes) disappear entirely.
    wu_cm = wu.T.reshape(6, M, _LANES)
    prior_cm = prior.T.reshape(12, M, _LANES)

    out_cm = _refine_pose_cm(wu_cm, prior_cm, tile_m)
    return out_cm.reshape(12, N_pad).T[:N].reshape(N, 3, 4)


# ------------------ pure-JAX reference (mirrors the PyTorch code) ------------------
def _ref_forward(wu, prior):
    w, u = wu[..., :3], wu[..., 3:]
    w0, w1, w2 = w[..., 0], w[..., 1], w[..., 2]
    O = jnp.zeros_like(w0)
    wx = jnp.stack([jnp.stack([O, -w2, w1], -1),
                    jnp.stack([w2, O, -w0], -1),
                    jnp.stack([-w1, w0, O], -1)], -2)
    theta = jnp.linalg.norm(w, axis=-1)[..., None, None]

    def tA(x):
        ans = jnp.zeros_like(x); denom = 1.0
        for i in range(_NTH + 1):
            if i > 0:
                denom *= 2 * i * (2 * i + 1)
            ans = ans + (-1) ** i * x ** (2 * i) / denom
        return ans

    def tB(x):
        ans = jnp.zeros_like(x); denom = 1.0
        for i in range(_NTH + 1):
            denom *= (2 * i + 1) * (2 * i + 2)
            ans = ans + (-1) ** i * x ** (2 * i) / denom
        return ans

    def tC(x):
        ans = jnp.zeros_like(x); denom = 1.0
        for i in range(_NTH + 1):
            denom *= (2 * i + 2) * (2 * i + 3)
            ans = ans + (-1) ** i * x ** (2 * i) / denom
        return ans

    I = jnp.eye(3, dtype=jnp.float32)
    A, B, C = tA(theta), tB(theta), tC(theta)
    wxwx = wx @ wx
    R = I + A * wx + B * wxwx
    V = I + B * wx + C * wxwx
    Rt = jnp.concatenate([R, V @ u[..., None]], axis=-1)

    R_a, t_a = Rt[..., :3], Rt[..., 3:]
    R_b, t_b = prior[..., :3], prior[..., 3:]
    R_new = R_b @ R_a
    t_new = (R_b @ t_a + t_b)[..., 0]
    return jnp.concatenate([R_new, t_new[..., None]], axis=-1)


if __name__ == "__main__":
    key = jax.random.PRNGKey(0)
    k1, k2 = jax.random.split(key)

    # Small shapes consistent with the module: a batch of N poses.
    N = 8
    refine = jax.random.normal(k1, (N, 6), jnp.float32) * 0.1   # se3 twist [N, 6]
    prior = jax.random.normal(k2, (N, 3, 4), jnp.float32)       # prior pose [N, 3, 4]

    out = jax.block_until_ready(refine_pose(refine, prior))
    ref = _ref_forward(refine, prior)
    assert out.shape == (N, 3, 4)
    assert jnp.allclose(out, ref, atol=1e-5, rtol=1e-5), "mismatch vs reference (N=8)"

    # Exercise the multi-step grid + ragged-N padding path (still tiny data).
    N2 = 2500
    k3, k4 = jax.random.split(k2)
    refine2 = jax.random.normal(k3, (N2, 6), jnp.float32) * 0.1
    prior2 = jax.random.normal(k4, (N2, 3, 4), jnp.float32)
    out2 = jax.block_until_ready(refine_pose(refine2, prior2, tile_m_max=8))
    ref2 = _ref_forward(refine2, prior2)
    assert jnp.allclose(out2, ref2, atol=1e-5, rtol=1e-5), "mismatch vs reference (N=2500)"

    print("KERNEL_OK")
</pallas_src>

<mosaic_0001>
module attributes {stable_mosaic.version = 11 : i64} {
  func.func @refine_pose_kernel(%arg0: i32, %arg1: memref<6x1x128xf32, #tpu.memory_space<vmem>>, %arg2: memref<12x1x128xf32, #tpu.memory_space<vmem>>, %arg3: memref<12x1x128xf32, #tpu.memory_space<vmem>>) attributes {dimension_semantics = [#tpu.dimension_semantics<parallel>], iteration_bounds = array<i64: 1>, scalar_prefetch = 0 : i64, scratch_operands = 0 : i64, tpu.core_type = #tpu.core_type<tc>, window_params = [{transform_indices = @transform_0, window_bounds = array<i64: 6, 1, 128>}, {transform_indices = @transform_1, window_bounds = array<i64: 12, 1, 128>}, {transform_indices = @transform_2, window_bounds = array<i64: 12, 1, 128>}]} {
    %c0 = arith.constant 0 : index
    %c0_0 = arith.constant 0 : index
    %c0_1 = arith.constant 0 : index
    %0 = vector.load %arg1[%c0, %c0_0, %c0_1] : memref<6x1x128xf32, #tpu.memory_space<vmem>>, vector<1x1x128xf32>
    %1 = vector.shape_cast %0 : vector<1x1x128xf32> to vector<1x128xf32>
    %c1 = arith.constant 1 : index
    %c0_2 = arith.constant 0 : index
    %c0_3 = arith.constant 0 : index
    %2 = vector.load %arg1[%c1, %c0_2, %c0_3] : memref<6x1x128xf32, #tpu.memory_space<vmem>>, vector<1x1x128xf32>
    %3 = vector.shape_cast %2 : vector<1x1x128xf32> to vector<1x128xf32>
    %c2 = arith.constant 2 : index
    %c0_4 = arith.constant 0 : index
    %c0_5 = arith.constant 0 : index
    %4 = vector.load %arg1[%c2, %c0_4, %c0_5] : memref<6x1x128xf32, #tpu.memory_space<vmem>>, vector<1x1x128xf32>
    %5 = vector.shape_cast %4 : vector<1x1x128xf32> to vector<1x128xf32>
    %c3 = arith.constant 3 : index
    %c0_6 = arith.constant 0 : index
    %c0_7 = arith.constant 0 : index
    %6 = vector.load %arg1[%c3, %c0_6, %c0_7] : memref<6x1x128xf32, #tpu.memory_space<vmem>>, vector<1x1x128xf32>
    %7 = vector.shape_cast %6 : vector<1x1x128xf32> to vector<1x128xf32>
    %c4 = arith.constant 4 : index
    %c0_8 = arith.constant 0 : index
    %c0_9 = arith.constant 0 : index
    %8 = vector.load %arg1[%c4, %c0_8, %c0_9] : memref<6x1x128xf32, #tpu.memory_space<vmem>>, vector<1x1x128xf32>
    %9 = vector.shape_cast %8 : vector<1x1x128xf32> to vector<1x128xf32>
    %c5 = arith.constant 5 : index
    %c0_10 = arith.constant 0 : index
    %c0_11 = arith.constant 0 : index
    %10 = vector.load %arg1[%c5, %c0_10, %c0_11] : memref<6x1x128xf32, #tpu.memory_space<vmem>>, vector<1x1x128xf32>
    %11 = vector.shape_cast %10 : vector<1x1x128xf32> to vector<1x128xf32>
    %12 = arith.mulf %1, %1 : vector<1x128xf32>
    %13 = arith.mulf %3, %3 : vector<1x128xf32>
    %14 = arith.mulf %5, %5 : vector<1x128xf32>
    %15 = arith.addf %12, %13 : vector<1x128xf32>
    %16 = arith.addf %15, %14 : vector<1x128xf32>
    %cst = arith.constant 1.95729415E-20 : f32
    %17 = vector.broadcast %cst : f32 to vector<1x128xf32>
    %18 = arith.mulf %17, %16 : vector<1x128xf32>
    %cst_12 = arith.constant -8.22063508E-18 : f32
    %19 = vector.broadcast %cst_12 : f32 to vector<1x128xf32>
    %20 = arith.addf %18, %19 : vector<1x128xf32>
    %cst_13 = arith.constant 8.89679095E-22 : f32
    %21 = vector.broadcast %cst_13 : f32 to vector<1x128xf32>
    %22 = arith.mulf %21, %16 : vector<1x128xf32>
    %cst_14 = arith.constant -4.11031759E-19 : f32
    %23 = vector.broadcast %cst_14 : f32 to vector<1x128xf32>
    %24 = arith.addf %22, %23 : vector<1x128xf32>
    %cst_15 = arith.constant 3.8681703E-23 : f32
    %25 = vector.broadcast %cst_15 : f32 to vector<1x128xf32>
    %26 = arith.mulf %25, %16 : vector<1x128xf32>
    %cst_16 = arith.constant -1.95729415E-20 : f32
    %27 = vector.broadcast %cst_16 : f32 to vector<1x128xf32>
    %28 = arith.addf %26, %27 : vector<1x128xf32>
    %29 = arith.mulf %20, %16 : vector<1x128xf32>
    %cst_17 = arith.constant 2.81145736E-15 : f32
    %30 = vector.broadcast %cst_17 : f32 to vector<1x128xf32>
    %31 = arith.addf %29, %30 : vector<1x128xf32>
    %32 = arith.mulf %24, %16 : vector<1x128xf32>
    %cst_18 = arith.constant 1.56192068E-16 : f32
    %33 = vector.broadcast %cst_18 : f32 to vector<1x128xf32>
    %34 = arith.addf %32, %33 : vector<1x128xf32>
    %35 = arith.mulf %28, %16 : vector<1x128xf32>
    %cst_19 = arith.constant 8.22063508E-18 : f32
    %36 = vector.broadcast %cst_19 : f32 to vector<1x128xf32>
    %37 = arith.addf %35, %36 : vector<1x128xf32>
    %38 = arith.mulf %31, %16 : vector<1x128xf32>
    %cst_20 = arith.constant -7.6471636E-13 : f32
    %39 = vector.broadcast %cst_20 : f32 to vector<1x128xf32>
    %40 = arith.addf %38, %39 : vector<1x128xf32>
    %41 = arith.mulf %34, %16 : vector<1x128xf32>
    %cst_21 = arith.constant -4.77947726E-14 : f32
    %42 = vector.broadcast %cst_21 : f32 to vector<1x128xf32>
    %43 = arith.addf %41, %42 : vector<1x128xf32>
    %44 = arith.mulf %37, %16 : vector<1x128xf32>
    %cst_22 = arith.constant -2.81145736E-15 : f32
    %45 = vector.broadcast %cst_22 : f32 to vector<1x128xf32>
    %46 = arith.addf %44, %45 : vector<1x128xf32>
    %47 = arith.mulf %40, %16 : vector<1x128xf32>
    %cst_23 = arith.constant 1.60590444E-10 : f32
    %48 = vector.broadcast %cst_23 : f32 to vector<1x128xf32>
    %49 = arith.addf %47, %48 : vector<1x128xf32>
    %50 = arith.mulf %43, %16 : vector<1x128xf32>
    %cst_24 = arith.constant 1.14707454E-11 : f32
    %51 = vector.broadcast %cst_24 : f32 to vector<1x128xf32>
    %52 = arith.addf %50, %51 : vector<1x128xf32>
    %53 = arith.mulf %46, %16 : vector<1x128xf32>
    %cst_25 = arith.constant 7.6471636E-13 : f32
    %54 = vector.broadcast %cst_25 : f32 to vector<1x128xf32>
    %55 = arith.addf %53, %54 : vector<1x128xf32>
    %56 = arith.mulf %49, %16 : vector<1x128xf32>
    %cst_26 = arith.constant -2.50521079E-8 : f32
    %57 = vector.broadcast %cst_26 : f32 to vector<1x128xf32>
    %58 = arith.addf %56, %57 : vector<1x128xf32>
    %59 = arith.mulf %52, %16 : vector<1x128xf32>
    %cst_27 = arith.constant -2.08767559E-9 : f32
    %60 = vector.broadcast %cst_27 : f32 to vector<1x128xf32>
    %61 = arith.addf %59, %60 : vector<1x128xf32>
    %62 = arith.mulf %55, %16 : vector<1x128xf32>
    %cst_28 = arith.constant -1.60590444E-10 : f32
    %63 = vector.broadcast %cst_28 : f32 to vector<1x128xf32>
    %64 = arith.addf %62, %63 : vector<1x128xf32>
    %65 = arith.mulf %58, %16 : vector<1x128xf32>
    %cst_29 = arith.constant 2.75573188E-6 : f32
    %66 = vector.broadcast %cst_29 : f32 to vector<1x128xf32>
    %67 = arith.addf %65, %66 : vector<1x128xf32>
    %68 = arith.mulf %61, %16 : vector<1x128xf32>
    %cst_30 = arith.constant 2.755732E-7 : f32
    %69 = vector.broadcast %cst_30 : f32 to vector<1x128xf32>
    %70 = arith.addf %68, %69 : vector<1x128xf32>
    %71 = arith.mulf %64, %16 : vector<1x128xf32>
    %cst_31 = arith.constant 2.50521079E-8 : f32
    %72 = vector.broadcast %cst_31 : f32 to vector<1x128xf32>
    %73 = arith.addf %71, %72 : vector<1x128xf32>
    %74 = arith.mulf %67, %16 : vector<1x128xf32>
    %cst_32 = arith.constant -1.98412701E-4 : f32
    %75 = vector.broadcast %cst_32 : f32 to vector<1x128xf32>
    %76 = arith.addf %74, %75 : vector<1x128xf32>
    %77 = arith.mulf %70, %16 : vector<1x128xf32>
    %cst_33 = arith.constant -2.48015876E-5 : f32
    %78 = vector.broadcast %cst_33 : f32 to vector<1x128xf32>
    %79 = arith.addf %77, %78 : vector<1x128xf32>
    %80 = arith.mulf %73, %16 : vector<1x128xf32>
    %cst_34 = arith.constant -2.75573188E-6 : f32
    %81 = vector.broadcast %cst_34 : f32 to vector<1x128xf32>
    %82 = arith.addf %80, %81 : vector<1x128xf32>
    %83 = arith.mulf %76, %16 : vector<1x128xf32>
    %cst_35 = arith.constant 0.00833333377 : f32
    %84 = vector.broadcast %cst_35 : f32 to vector<1x128xf32>
    %85 = arith.addf %83, %84 : vector<1x128xf32>
    %86 = arith.mulf %79, %16 : vector<1x128xf32>
    %cst_36 = arith.constant 0.00138888892 : f32
    %87 = vector.broadcast %cst_36 : f32 to vector<1x128xf32>
    %88 = arith.addf %86, %87 : vector<1x128xf32>
    %89 = arith.mulf %82, %16 : vector<1x128xf32>
    %cst_37 = arith.constant 1.98412701E-4 : f32
    %90 = vector.broadcast %cst_37 : f32 to vector<1x128xf32>
    %91 = arith.addf %89, %90 : vector<1x128xf32>
    %92 = arith.mulf %85, %16 : vector<1x128xf32>
    %cst_38 = arith.constant -0.166666672 : f32
    %93 = vector.broadcast %cst_38 : f32 to vector<1x128xf32>
    %94 = arith.addf %92, %93 : vector<1x128xf32>
    %95 = arith.mulf %88, %16 : vector<1x128xf32>
    %cst_39 = arith.constant -0.0416666679 : f32
    %96 = vector.broadcast %cst_39 : f32 to vector<1x128xf32>
    %97 = arith.addf %95, %96 : vector<1x128xf32>
    %98 = arith.mulf %91, %16 : vector<1x128xf32>
    %cst_40 = arith.constant -0.00833333377 : f32
    %99 = vector.broadcast %cst_40 : f32 to vector<1x128xf32>
    %100 = arith.addf %98, %99 : vector<1x128xf32>
    %101 = arith.mulf %94, %16 : vector<1x128xf32>
    %cst_41 = arith.constant 1.000000e+00 : f32
    %102 = vector.broadcast %cst_41 : f32 to vector<1x128xf32>
    %103 = arith.addf %101, %102 : vector<1x128xf32>
    %104 = arith.mulf %97, %16 : vector<1x128xf32>
    %cst_42 = arith.constant 5.000000e-01 : f32
    %105 = vector.broadcast %cst_42 : f32 to vector<1x128xf32>
    %106 = arith.addf %104, %105 : vector<1x128xf32>
    %107 = arith.mulf %100, %16 : vector<1x128xf32>
    %cst_43 = arith.constant 0.166666672 : f32
    %108 = vector.broadcast %cst_43 : f32 to vector<1x128xf32>
    %109 = arith.addf %107, %108 : vector<1x128xf32>
    %110 = arith.mulf %1, %3 : vector<1x128xf32>
    %111 = arith.mulf %1, %5 : vector<1x128xf32>
    %112 = arith.mulf %3, %5 : vector<1x128xf32>
    %113 = arith.addf %13, %14 : vector<1x128xf32>
    %cst_44 = arith.constant 0.000000e+00 : f32
    %114 = vector.broadcast %cst_44 : f32 to vector<1x128xf32>
    %115 = arith.subf %114, %113 : vector<1x128xf32>
    %116 = arith.addf %12, %14 : vector<1x128xf32>
    %cst_45 = arith.constant 0.000000e+00 : f32
    %117 = vector.broadcast %cst_45 : f32 to vector<1x128xf32>
    %118 = arith.subf %117, %116 : vector<1x128xf32>
    %119 = arith.addf %12, %13 : vector<1x128xf32>
    %cst_46 = arith.constant 0.000000e+00 : f32
    %120 = vector.broadcast %cst_46 : f32 to vector<1x128xf32>
    %121 = arith.subf %120, %119 : vector<1x128xf32>
    %122 = arith.mulf %103, %1 : vector<1x128xf32>
    %123 = arith.mulf %103, %3 : vector<1x128xf32>
    %124 = arith.mulf %103, %5 : vector<1x128xf32>
    %125 = arith.mulf %106, %110 : vector<1x128xf32>
    %126 = arith.mulf %106, %111 : vector<1x128xf32>
    %127 = arith.mulf %106, %112 : vector<1x128xf32>
    %128 = arith.mulf %106, %115 : vector<1x128xf32>
    %cst_47 = arith.constant 1.000000e+00 : f32
    %129 = vector.broadcast %cst_47 : f32 to vector<1x128xf32>
    %130 = arith.addf %129, %128 : vector<1x128xf32>
    %131 = arith.subf %125, %124 : vector<1x128xf32>
    %132 = arith.addf %126, %123 : vector<1x128xf32>
    %133 = arith.addf %125, %124 : vector<1x128xf32>
    %134 = arith.mulf %106, %118 : vector<1x128xf32>
    %cst_48 = arith.constant 1.000000e+00 : f32
    %135 = vector.broadcast %cst_48 : f32 to vector<1x128xf32>
    %136 = arith.addf %135, %134 : vector<1x128xf32>
    %137 = arith.subf %127, %122 : vector<1x128xf32>
    %138 = arith.subf %126, %123 : vector<1x128xf32>
    %139 = arith.addf %127, %122 : vector<1x128xf32>
    %140 = arith.mulf %106, %121 : vector<1x128xf32>
    %cst_49 = arith.constant 1.000000e+00 : f32
    %141 = vector.broadcast %cst_49 : f32 to vector<1x128xf32>
    %142 = arith.addf %141, %140 : vector<1x128xf32>
    %143 = arith.mulf %106, %1 : vector<1x128xf32>
    %144 = arith.mulf %106, %3 : vector<1x128xf32>
    %145 = arith.mulf %106, %5 : vector<1x128xf32>
    %146 = arith.mulf %109, %110 : vector<1x128xf32>
    %147 = arith.mulf %109, %111 : vector<1x128xf32>
    %148 = arith.mulf %109, %112 : vector<1x128xf32>
    %149 = arith.mulf %109, %115 : vector<1x128xf32>
    %cst_50 = arith.constant 1.000000e+00 : f32
    %150 = vector.broadcast %cst_50 : f32 to vector<1x128xf32>
    %151 = arith.addf %150, %149 : vector<1x128xf32>
    %152 = arith.subf %146, %145 : vector<1x128xf32>
    %153 = arith.addf %147, %144 : vector<1x128xf32>
    %154 = arith.addf %146, %145 : vector<1x128xf32>
    %155 = arith.mulf %109, %118 : vector<1x128xf32>
    %cst_51 = arith.constant 1.000000e+00 : f32
    %156 = vector.broadcast %cst_51 : f32 to vector<1x128xf32>
    %157 = arith.addf %156, %155 : vector<1x128xf32>
    %158 = arith.subf %148, %143 : vector<1x128xf32>
    %159 = arith.subf %147, %144 : vector<1x128xf32>
    %160 = arith.addf %148, %143 : vector<1x128xf32>
    %161 = arith.mulf %109, %121 : vector<1x128xf32>
    %cst_52 = arith.constant 1.000000e+00 : f32
    %162 = vector.broadcast %cst_52 : f32 to vector<1x128xf32>
    %163 = arith.addf %162, %161 : vector<1x128xf32>
    %164 = arith.mulf %151, %7 : vector<1x128xf32>
    %165 = arith.mulf %152, %9 : vector<1x128xf32>
    %166 = arith.addf %164, %165 : vector<1x128xf32>
    %167 = arith.mulf %153, %11 : vector<1x128xf32>
    %168 = arith.addf %166, %167 : vector<1x128xf32>
    %169 = arith.mulf %154, %7 : vector<1x128xf32>
    %170 = arith.mulf %157, %9 : vector<1x128xf32>
    %171 = arith.addf %169, %170 : vector<1x128xf32>
    %172 = arith.mulf %158, %11 : vector<1x128xf32>
    %173 = arith.addf %171, %172 : vector<1x128xf32>
    %174 = arith.mulf %159, %7 : vector<1x128xf32>
    %175 = arith.mulf %160, %9 : vector<1x128xf32>
    %176 = arith.addf %174, %175 : vector<1x128xf32>
    %177 = arith.mulf %163, %11 : vector<1x128xf32>
    %178 = arith.addf %176, %177 : vector<1x128xf32>
    %c0_53 = arith.constant 0 : index
    %c0_54 = arith.constant 0 : index
    %c0_55 = arith.constant 0 : index
    %179 = vector.load %arg2[%c0_53, %c0_54, %c0_55] : memref<12x1x128xf32, #tpu.memory_space<vmem>>, vector<1x1x128xf32>
    %180 = vector.shape_cast %179 : vector<1x1x128xf32> to vector<1x128xf32>
    %c1_56 = arith.constant 1 : index
    %c0_57 = arith.constant 0 : index
    %c0_58 = arith.constant 0 : index
    %181 = vector.load %arg2[%c1_56, %c0_57, %c0_58] : memref<12x1x128xf32, #tpu.memory_space<vmem>>, vector<1x1x128xf32>
    %182 = vector.shape_cast %181 : vector<1x1x128xf32> to vector<1x128xf32>
    %c2_59 = arith.constant 2 : index
    %c0_60 = arith.constant 0 : index
    %c0_61 = arith.constant 0 : index
    %183 = vector.load %arg2[%c2_59, %c0_60, %c0_61] : memref<12x1x128xf32, #tpu.memory_space<vmem>>, vector<1x1x128xf32>
    %184 = vector.shape_cast %183 : vector<1x1x128xf32> to vector<1x128xf32>
    %c3_62 = arith.constant 3 : index
    %c0_63 = arith.constant 0 : index
    %c0_64 = arith.constant 0 : index
    %185 = vector.load %arg2[%c3_62, %c0_63, %c0_64] : memref<12x1x128xf32, #tpu.memory_space<vmem>>, vector<1x1x128xf32>
    %186 = vector.shape_cast %185 : vector<1x1x128xf32> to vector<1x128xf32>
    %187 = arith.mulf %180, %130 : vector<1x128xf32>
    %188 = arith.mulf %182, %133 : vector<1x128xf32>
    %189 = arith.addf %187, %188 : vector<1x128xf32>
    %190 = arith.mulf %184, %138 : vector<1x128xf32>
    %191 = arith.addf %189, %190 : vector<1x128xf32>
    %c0_65 = arith.constant 0 : index
    %c0_66 = arith.constant 0 : index
    %c0_67 = arith.constant 0 : index
    %192 = vector.load %arg3[%c0_65, %c0_66, %c0_67] : memref<12x1x128xf32, #tpu.memory_space<vmem>>, vector<1x1x128xf32>
    %193 = vector.shape_cast %192 : vector<1x1x128xf32> to vector<1x128xf32>
    %194 = vector.shape_cast %191 : vector<1x128xf32> to vector<1x1x128xf32>
    tpu.vector_store %arg3[%c0_65, %c0_66, %c0_67], %194 {strides = array<i32>} : memref<12x1x128xf32, #tpu.memory_space<vmem>>, vector<1x1x128xf32>,
    %195 = arith.mulf %180, %131 : vector<1x128xf32>
    %196 = arith.mulf %182, %136 : vector<1x128xf32>
    %197 = arith.addf %195, %196 : vector<1x128xf32>
    %198 = arith.mulf %184, %139 : vector<1x128xf32>
    %199 = arith.addf %197, %198 : vector<1x128xf32>
    %c1_68 = arith.constant 1 : index
    %c0_69 = arith.constant 0 : index
    %c0_70 = arith.constant 0 : index
    %200 = vector.load %arg3[%c1_68, %c0_69, %c0_70] : memref<12x1x128xf32, #tpu.memory_space<vmem>>, vector<1x1x128xf32>
    %201 = vector.shape_cast %200 : vector<1x1x128xf32> to vector<1x128xf32>
    %202 = vector.shape_cast %199 : vector<1x128xf32> to vector<1x1x128xf32>
    tpu.vector_store %arg3[%c1_68, %c0_69, %c0_70], %202 {strides = array<i32>} : memref<12x1x128xf32, #tpu.memory_space<vmem>>, vector<1x1x128xf32>,
    %203 = arith.mulf %180, %132 : vector<1x128xf32>
    %204 = arith.mulf %182, %137 : vector<1x128xf32>
    %205 = arith.addf %203, %204 : vector<1x128xf32>
    %206 = arith.mulf %184, %142 : vector<1x128xf32>
    %207 = arith.addf %205, %206 : vector<1x128xf32>
    %c2_71 = arith.constant 2 : index
    %c0_72 = arith.constant 0 : index
    %c0_73 = arith.constant 0 : index
    %208 = vector.load %arg3[%c2_71, %c0_72, %c0_73] : memref<12x1x128xf32, #tpu.memory_space<vmem>>, vector<1x1x128xf32>
    %209 = vector.shape_cast %208 : vector<1x1x128xf32> to vector<1x128xf32>
    %210 = vector.shape_cast %207 : vector<1x128xf32> to vector<1x1x128xf32>
    tpu.vector_store %arg3[%c2_71, %c0_72, %c0_73], %210 {strides = array<i32>} : memref<12x1x128xf32, #tpu.memory_space<vmem>>, vector<1x1x128xf32>,
    %211 = arith.mulf %180, %168 : vector<1x128xf32>
    %212 = arith.mulf %182, %173 : vector<1x128xf32>
    %213 = arith.addf %211, %212 : vector<1x128xf32>
    %214 = arith.mulf %184, %178 : vector<1x128xf32>
    %215 = arith.addf %213, %214 : vector<1x128xf32>
    %216 = arith.addf %215, %186 : vector<1x128xf32>
    %c3_74 = arith.constant 3 : index
    %c0_75 = arith.constant 0 : index
    %c0_76 = arith.constant 0 : index
    %217 = vector.load %arg3[%c3_74, %c0_75, %c0_76] : memref<12x1x128xf32, #tpu.memory_space<vmem>>, vector<1x1x128xf32>
    %218 = vector.shape_cast %217 : vector<1x1x128xf32> to vector<1x128xf32>
    %219 = vector.shape_cast %216 : vector<1x128xf32> to vector<1x1x128xf32>
    tpu.vector_store %arg3[%c3_74, %c0_75, %c0_76], %219 {strides = array<i32>} : memref<12x1x128xf32, #tpu.memory_space<vmem>>, vector<1x1x128xf32>,
    %c4_77 = arith.constant 4 : index
    %c0_78 = arith.constant 0 : index
    %c0_79 = arith.constant 0 : index
    %220 = vector.load %arg2[%c4_77, %c0_78, %c0_79] : memref<12x1x128xf32, #tpu.memory_space<vmem>>, vector<1x1x128xf32>
    %221 = vector.shape_cast %220 : vector<1x1x128xf32> to vector<1x128xf32>
    %c5_80 = arith.constant 5 : index
    %c0_81 = arith.constant 0 : index
    %c0_82 = arith.constant 0 : index
    %222 = vector.load %arg2[%c5_80, %c0_81, %c0_82] : memref<12x1x128xf32, #tpu.memory_space<vmem>>, vector<1x1x128xf32>
    %223 = vector.shape_cast %222 : vector<1x1x128xf32> to vector<1x128xf32>
    %c6 = arith.constant 6 : index
    %c0_83 = arith.constant 0 : index
    %c0_84 = arith.constant 0 : index
    %224 = vector.load %arg2[%c6, %c0_83, %c0_84] : memref<12x1x128xf32, #tpu.memory_space<vmem>>, vector<1x1x128xf32>
    %225 = vector.shape_cast %224 : vector<1x1x128xf32> to vector<1x128xf32>
    %c7 = arith.constant 7 : index
    %c0_85 = arith.constant 0 : index
    %c0_86 = arith.constant 0 : index
    %226 = vector.load %arg2[%c7, %c0_85, %c0_86] : memref<12x1x128xf32, #tpu.memory_space<vmem>>, vector<1x1x128xf32>
    %227 = vector.shape_cast %226 : vector<1x1x128xf32> to vector<1x128xf32>
    %228 = arith.mulf %221, %130 : vector<1x128xf32>
    %229 = arith.mulf %223, %133 : vector<1x128xf32>
    %230 = arith.addf %228, %229 : vector<1x128xf32>
    %231 = arith.mulf %225, %138 : vector<1x128xf32>
    %232 = arith.addf %230, %231 : vector<1x128xf32>
    %c4_87 = arith.constant 4 : index
    %c0_88 = arith.constant 0 : index
    %c0_89 = arith.constant 0 : index
    %233 = vector.load %arg3[%c4_87, %c0_88, %c0_89] : memref<12x1x128xf32, #tpu.memory_space<vmem>>, vector<1x1x128xf32>
    %234 = vector.shape_cast %233 : vector<1x1x128xf32> to vector<1x128xf32>
    %235 = vector.shape_cast %232 : vector<1x128xf32> to vector<1x1x128xf32>
    tpu.vector_store %arg3[%c4_87, %c0_88, %c0_89], %235 {strides = array<i32>} : memref<12x1x128xf32, #tpu.memory_space<vmem>>, vector<1x1x128xf32>,
    %236 = arith.mulf %221, %131 : vector<1x128xf32>
    %237 = arith.mulf %223, %136 : vector<1x128xf32>
    %238 = arith.addf %236, %237 : vector<1x128xf32>
    %239 = arith.mulf %225, %139 : vector<1x128xf32>
    %240 = arith.addf %238, %239 : vector<1x128xf32>
    %c5_90 = arith.constant 5 : index
    %c0_91 = arith.constant 0 : index
    %c0_92 = arith.constant 0 : index
    %241 = vector.load %arg3[%c5_90, %c0_91, %c0_92] : memref<12x1x128xf32, #tpu.memory_space<vmem>>, vector<1x1x128xf32>
    %242 = vector.shape_cast %241 : vector<1x1x128xf32> to vector<1x128xf32>
    %243 = vector.shape_cast %240 : vector<1x128xf32> to vector<1x1x128xf32>
    tpu.vector_store %arg3[%c5_90, %c0_91, %c0_92], %243 {strides = array<i32>} : memref<12x1x128xf32, #tpu.memory_space<vmem>>, vector<1x1x128xf32>,
    %244 = arith.mulf %221, %132 : vector<1x128xf32>
    %245 = arith.mulf %223, %137 : vector<1x128xf32>
    %246 = arith.addf %244, %245 : vector<1x128xf32>
    %247 = arith.mulf %225, %142 : vector<1x128xf32>
    %248 = arith.addf %246, %247 : vector<1x128xf32>
    %c6_93 = arith.constant 6 : index
    %c0_94 = arith.constant 0 : index
    %c0_95 = arith.constant 0 : index
    %249 = vector.load %arg3[%c6_93, %c0_94, %c0_95] : memref<12x1x128xf32, #tpu.memory_space<vmem>>, vector<1x1x128xf32>
    %250 = vector.shape_cast %249 : vector<1x1x128xf32> to vector<1x128xf32>
    %251 = vector.shape_cast %248 : vector<1x128xf32> to vector<1x1x128xf32>
    tpu.vector_store %arg3[%c6_93, %c0_94, %c0_95], %251 {strides = array<i32>} : memref<12x1x128xf32, #tpu.memory_space<vmem>>, vector<1x1x128xf32>,
    %252 = arith.mulf %221, %168 : vector<1x128xf32>
    %253 = arith.mulf %223, %173 : vector<1x128xf32>
    %254 = arith.addf %252, %253 : vector<1x128xf32>
    %255 = arith.mulf %225, %178 : vector<1x128xf32>
    %256 = arith.addf %254, %255 : vector<1x128xf32>
    %257 = arith.addf %256, %227 : vector<1x128xf32>
    %c7_96 = arith.constant 7 : index
    %c0_97 = arith.constant 0 : index
    %c0_98 = arith.constant 0 : index
    %258 = vector.load %arg3[%c7_96, %c0_97, %c0_98] : memref<12x1x128xf32, #tpu.memory_space<vmem>>, vector<1x1x128xf32>
    %259 = vector.shape_cast %258 : vector<1x1x128xf32> to vector<1x128xf32>
    %260 = vector.shape_cast %257 : vector<1x128xf32> to vector<1x1x128xf32>
    tpu.vector_store %arg3[%c7_96, %c0_97, %c0_98], %260 {strides = array<i32>} : memref<12x1x128xf32, #tpu.memory_space<vmem>>, vector<1x1x128xf32>,
    %c8 = arith.constant 8 : index
    %c0_99 = arith.constant 0 : index
    %c0_100 = arith.constant 0 : index
    %261 = vector.load %arg2[%c8, %c0_99, %c0_100] : memref<12x1x128xf32, #tpu.memory_space<vmem>>, vector<1x1x128xf32>
    %262 = vector.shape_cast %261 : vector<1x1x128xf32> to vector<1x128xf32>
    %c9 = arith.constant 9 : index
    %c0_101 = arith.constant 0 : index
    %c0_102 = arith.constant 0 : index
    %263 = vector.load %arg2[%c9, %c0_101, %c0_102] : memref<12x1x128xf32, #tpu.memory_space<vmem>>, vector<1x1x128xf32>
    %264 = vector.shape_cast %263 : vector<1x1x128xf32> to vector<1x128xf32>
    %c10 = arith.constant 10 : index
    %c0_103 = arith.constant 0 : index
    %c0_104 = arith.constant 0 : index
    %265 = vector.load %arg2[%c10, %c0_103, %c0_104] : memref<12x1x128xf32, #tpu.memory_space<vmem>>, vector<1x1x128xf32>
    %266 = vector.shape_cast %265 : vector<1x1x128xf32> to vector<1x128xf32>
    %c11 = arith.constant 11 : index
    %c0_105 = arith.constant 0 : index
    %c0_106 = arith.constant 0 : index
    %267 = vector.load %arg2[%c11, %c0_105, %c0_106] : memref<12x1x128xf32, #tpu.memory_space<vmem>>, vector<1x1x128xf32>
    %268 = vector.shape_cast %267 : vector<1x1x128xf32> to vector<1x128xf32>
    %269 = arith.mulf %262, %130 : vector<1x128xf32>
    %270 = arith.mulf %264, %133 : vector<1x128xf32>
    %271 = arith.addf %269, %270 : vector<1x128xf32>
    %272 = arith.mulf %266, %138 : vector<1x128xf32>
    %273 = arith.addf %271, %272 : vector<1x128xf32>
    %c8_107 = arith.constant 8 : index
    %c0_108 = arith.constant 0 : index
    %c0_109 = arith.constant 0 : index
    %274 = vector.load %arg3[%c8_107, %c0_108, %c0_109] : memref<12x1x128xf32, #tpu.memory_space<vmem>>, vector<1x1x128xf32>
    %275 = vector.shape_cast %274 : vector<1x1x128xf32> to vector<1x128xf32>
    %276 = vector.shape_cast %273 : vector<1x128xf32> to vector<1x1x128xf32>
    tpu.vector_store %arg3[%c8_107, %c0_108, %c0_109], %276 {strides = array<i32>} : memref<12x1x128xf32, #tpu.memory_space<vmem>>, vector<1x1x128xf32>,
    %277 = arith.mulf %262, %131 : vector<1x128xf32>
    %278 = arith.mulf %264, %136 : vector<1x128xf32>
    %279 = arith.addf %277, %278 : vector<1x128xf32>
    %280 = arith.mulf %266, %139 : vector<1x128xf32>
    %281 = arith.addf %279, %280 : vector<1x128xf32>
    %c9_110 = arith.constant 9 : index
    %c0_111 = arith.constant 0 : index
    %c0_112 = arith.constant 0 : index
    %282 = vector.load %arg3[%c9_110, %c0_111, %c0_112] : memref<12x1x128xf32, #tpu.memory_space<vmem>>, vector<1x1x128xf32>
    %283 = vector.shape_cast %282 : vector<1x1x128xf32> to vector<1x128xf32>
    %284 = vector.shape_cast %281 : vector<1x128xf32> to vector<1x1x128xf32>
    tpu.vector_store %arg3[%c9_110, %c0_111, %c0_112], %284 {strides = array<i32>} : memref<12x1x128xf32, #tpu.memory_space<vmem>>, vector<1x1x128xf32>,
    %285 = arith.mulf %262, %132 : vector<1x128xf32>
    %286 = arith.mulf %264, %137 : vector<1x128xf32>
    %287 = arith.addf %285, %286 : vector<1x128xf32>
    %288 = arith.mulf %266, %142 : vector<1x128xf32>
    %289 = arith.addf %287, %288 : vector<1x128xf32>
    %c10_113 = arith.constant 10 : index
    %c0_114 = arith.constant 0 : index
    %c0_115 = arith.constant 0 : index
    %290 = vector.load %arg3[%c10_113, %c0_114, %c0_115] : memref<12x1x128xf32, #tpu.memory_space<vmem>>, vector<1x1x128xf32>
    %291 = vector.shape_cast %290 : vector<1x1x128xf32> to vector<1x128xf32>
    %292 = vector.shape_cast %289 : vector<1x128xf32> to vector<1x1x128xf32>
    tpu.vector_store %arg3[%c10_113, %c0_114, %c0_115], %292 {strides = array<i32>} : memref<12x1x128xf32, #tpu.memory_space<vmem>>, vector<1x1x128xf32>,
    %293 = arith.mulf %262, %168 : vector<1x128xf32>
    %294 = arith.mulf %264, %173 : vector<1x128xf32>
    %295 = arith.addf %293, %294 : vector<1x128xf32>
    %296 = arith.mulf %266, %178 : vector<1x128xf32>
    %297 = arith.addf %295, %296 : vector<1x128xf32>
    %298 = arith.addf %297, %268 : vector<1x128xf32>
    %c11_116 = arith.constant 11 : index
    %c0_117 = arith.constant 0 : index
    %c0_118 = arith.constant 0 : index
    %299 = vector.load %arg3[%c11_116, %c0_117, %c0_118] : memref<12x1x128xf32, #tpu.memory_space<vmem>>, vector<1x1x128xf32>
    %300 = vector.shape_cast %299 : vector<1x1x128xf32> to vector<1x128xf32>
    %301 = vector.shape_cast %298 : vector<1x128xf32> to vector<1x1x128xf32>
    tpu.vector_store %arg3[%c11_116, %c0_117, %c0_118], %301 {strides = array<i32>} : memref<12x1x128xf32, #tpu.memory_space<vmem>>, vector<1x1x128xf32>,
    return
  }
  func.func @transform_0(%arg0: i32) -> (i32, i32, i32) {
    %c0_i32 = arith.constant 0 : i32
    %c0_i32_0 = arith.constant 0 : i32
    %c0_i32_1 = arith.constant 0 : i32
    return %c0_i32, %arg0, %c0_i32_0 : i32, i32, i32
  }
  func.func @transform_1(%arg0: i32) -> (i32, i32, i32) {
    %c0_i32 = arith.constant 0 : i32
    %c0_i32_0 = arith.constant 0 : i32
    %c0_i32_1 = arith.constant 0 : i32
    return %c0_i32, %arg0, %c0_i32_0 : i32, i32, i32
  }
  func.func @transform_2(%arg0: i32) -> (i32, i32, i32) {
    %c0_i32 = arith.constant 0 : i32
    %c0_i32_0 = arith.constant 0 : i32
    %c0_i32_1 = arith.constant 0 : i32
    return %c0_i32, %arg0, %c0_i32_0 : i32, i32, i32
  }
}

</mosaic_0001>

<llo_original>
// kernel: tpu_custom_call.1
$region0: #{tpu_custom_call.1}
  #allocation0 [shape = 'u32[]', space=smem, size = 0x4, offset = 0x4, fixed_abs, tag = 'smem constant byte address 0x4 - core index']
  #allocation1 [shape = 'u32[72,128]{1,0:T(1,128)}', space=vmem, size = 0x9000, scoped, tag = 'internal scratch']
  %s0 = inlined_call_operand.hbm [shape: f32[6,1,128], index: 0, kind: input, shape index: {}]
  %s1 = inlined_call_operand.hbm [shape: f32[12,1,128], index: 1, kind: input, shape index: {}]
  %s2 = inlined_call_operand.hbm [shape: f32[12,1,128], index: 2, kind: output, shape index: {}]
  %s3 = sld [smem:[#allocation0]]
  $region26: #{tpu_custom_call.1} parent=0
    _
  %s5 = ssub.s32 1, %s3
  %s6 = scalar_select 0, %s5, %s3
  $region1: #{tpu_custom_call.1} parent=0
    #allocation2 [shape = 'u8[3072]{0}', space=vmem, size = 0xc00, scoped, tag = 'input window, operand 0, single buffered']
    #allocation3 [shape = 's32[1]{0}', space=sflag, size = 0x4, scoped, tag = 'scoped memory for tpu_custom_call.1']
    #allocation4 [shape = 's32[1]{0}', space=sflag, size = 0x4, scoped, tag = 'scoped memory for tpu_custom_call.1']
    #allocation5 [shape = 'u8[6144]{0}', space=vmem, size = 0x1800, scoped, tag = 'input window, operand 1, single buffered']
    #allocation6 [shape = 's32[1]{0}', space=sflag, size = 0x4, scoped, tag = 'scoped memory for tpu_custom_call.1']
    #allocation7 [shape = 'u8[6144]{0}', space=vmem, size = 0x1800, scoped, tag = 'output window, operand 0, single buffered']
    %7 = vsyncpa [#allocation3], 0
    %8 = vsyncpa [#allocation6], 0
    %9 = vsyncpa [#allocation4], 0
    // Predicated region
    $region2: #{tpu_custom_call.1} parent=1 // pred_check
      _
    $region3: #{tpu_custom_call.1} parent=1 // pred_check_branch
      %11 = sbr.rel (0) target = $region5
    $region4: #{tpu_custom_call.1} parent=1 // pred_region
      %13 = vsyncadd [#allocation3], 0
      %s14 = sshll.u32 %s0, 4
      %s15 = int_to_ptr.hbm [resolvable:$true] %s14
      %s16 = sshll.u32 [#allocation2], 4
      %s17 = int_to_ptr.vmem [resolvable:$true] %s16
      %22 = dma.hbm_to_vmem [thread:$0]  %s15, 96, %s17, [#allocation3], 16, 16, 1
    $region5: #{tpu_custom_call.1} parent=1 // pred_fallthru
      _
    // Predicated region
    $region6: #{tpu_custom_call.1} parent=1 // pred_check
      _
    $region7: #{tpu_custom_call.1} parent=1 // pred_check_branch
      %24 = sbr.rel (0) target = $region9
    $region8: #{tpu_custom_call.1} parent=1 // pred_region
      %26 = vsyncadd [#allocation6], 0
      %s27 = sshll.u32 %s1, 4
      %s28 = int_to_ptr.hbm [resolvable:$true] %s27
      %s29 = sshll.u32 [#allocation5], 4
      %s30 = int_to_ptr.vmem [resolvable:$true] %s29
      %35 = dma.hbm_to_vmem [thread:$0]  %s28, 192, %s30, [#allocation6], 16, 16, 1
    $region9: #{tpu_custom_call.1} parent=1 // pred_fallthru
      _
    // Predicated region
    $region10: #{tpu_custom_call.1} parent=1 // pred_check
      _
    $region11: #{tpu_custom_call.1} parent=1 // pred_check_branch
      %37 = sbr.rel (0) target = $region13
    $region12: #{tpu_custom_call.1} parent=1 // pred_region
      %39 = dma.done [#allocation3], 96
    $region13: #{tpu_custom_call.1} parent=1 // pred_fallthru
      _
    // Predicated region
    $region14: #{tpu_custom_call.1} parent=1 // pred_check
      _
    $region15: #{tpu_custom_call.1} parent=1 // pred_check_branch
      %41 = sbr.rel (0) target = $region17
    $region16: #{tpu_custom_call.1} parent=1 // pred_region
      %43 = dma.done [#allocation6], 192
    $region17: #{tpu_custom_call.1} parent=1 // pred_fallthru
      _
    %v44 = vld [vmem:[#allocation2] sm:$0x1]
    %s45 = scalar_lea.vmem [#allocation2], 1
    %v46 = vld [vmem:[%s45] sm:$0x1]
    %s47 = scalar_lea.vmem [#allocation2], 2
    %v48 = vld [vmem:[%s47] sm:$0x1]
    %s49 = scalar_lea.vmem [#allocation2], 3
    %v50 = vld [vmem:[%s49] sm:$0x1]
    %s51 = scalar_lea.vmem [#allocation2], 4
    %v52 = vld [vmem:[%s51] sm:$0x1]
    %s53 = scalar_lea.vmem [#allocation2], 5
    %v54 = vld [vmem:[%s53] sm:$0x1]
    %v55 = vmul.f32 %v44, %v44
    %v56 = vmul.f32 %v46, %v46
    %v57 = vmul.f32 %v48, %v48
    %v58 = vadd.f32 %v55, %v56
    %v59 = vadd.f32 %v58, %v57
    %v60 = vmul.f32 %v59, 1.9572942e-20
    %v61 = vadd.f32 %v60, -8.220635e-18
    %v62 = vmul.f32 %v59, 8.896791e-22
    %v63 = vadd.f32 %v62, -4.1103176e-19
    %v64 = vmul.f32 %v59, 3.8681703e-23
    %v65 = vadd.f32 %v64, -1.9572942e-20
    %v66 = vmul.f32 %v61, %v59
    %v67 = vadd.f32 %v66, 2.8114574e-15
    %v68 = vmul.f32 %v63, %v59
    %v69 = vadd.f32 %v68, 1.5619207e-16
    %v70 = vmul.f32 %v65, %v59
    %v71 = vadd.f32 %v70, 8.220635e-18
    %v72 = vmul.f32 %v67, %v59
    %v73 = vadd.f32 %v72, -7.6471636e-13
    %v74 = vmul.f32 %v69, %v59
    %v75 = vadd.f32 %v74, -4.7794773e-14
    %v76 = vmul.f32 %v71, %v59
    %v77 = vadd.f32 %v76, -2.8114574e-15
    %v78 = vmul.f32 %v73, %v59
    %v79 = vadd.f32 %v78, 1.6059044e-10
    %v80 = vmul.f32 %v75, %v59
    %v81 = vadd.f32 %v80, 1.1470745e-11
    %v82 = vmul.f32 %v77, %v59
    %v83 = vadd.f32 %v82, 7.6471636e-13
    %v84 = vmul.f32 %v79, %v59
    %v85 = vadd.f32 %v84, -2.5052108e-08
    %v86 = vmul.f32 %v81, %v59
    %v87 = vadd.f32 %v86, -2.0876756e-09
    %v88 = vmul.f32 %v83, %v59
    %v89 = vadd.f32 %v88, -1.6059044e-10
    %v90 = vmul.f32 %v85, %v59
    %v91 = vadd.f32 %v90, 2.7557319e-06
    %v92 = vmul.f32 %v87, %v59
    %v93 = vadd.f32 %v92, 2.755732e-07
    %v94 = vmul.f32 %v89, %v59
    %v95 = vadd.f32 %v94, 2.5052108e-08
    %v96 = vmul.f32 %v91, %v59
    %v97 = vadd.f32 %v96, -0.0001984127
    %v98 = vmul.f32 %v93, %v59
    %v99 = vadd.f32 %v98, -2.4801588e-05
    %v100 = vmul.f32 %v95, %v59
    %v101 = vadd.f32 %v100, -2.7557319e-06
    %v102 = vmul.f32 %v97, %v59
    %v103 = vadd.f32 %v102, 0.008333334
    %v104 = vmul.f32 %v99, %v59
    %v105 = vadd.f32 %v104, 0.0013888889
    %v106 = vmul.f32 %v101, %v59
    %v107 = vadd.f32 %v106, 0.0001984127
    %v108 = vmul.f32 %v103, %v59
    %v109 = vadd.f32 %v108, -0.16666667
    %v110 = vmul.f32 %v105, %v59
    %v111 = vadd.f32 %v110, -0.041666668
    %v112 = vmul.f32 %v107, %v59
    %v113 = vadd.f32 %v112, -0.008333334
    %v114 = vmul.f32 %v109, %v59
    %v115 = vadd.f32 %v114, 1.0
    %v116 = vmul.f32 %v111, %v59
    %v117 = vadd.f32 %v116, 0.5
    %v118 = vmul.f32 %v113, %v59
    %v119 = vadd.f32 %v118, 0.16666667
    %v120 = vmul.f32 %v44, %v46
    %v121 = vmul.f32 %v44, %v48
    %v122 = vmul.f32 %v46, %v48
    %v123 = vadd.f32 %v56, %v57
    %v124 = vsub.f32 0.0, %v123
    %v125 = vadd.f32 %v55, %v57
    %v126 = vsub.f32 0.0, %v125
    %v127 = vsub.f32 0.0, %v58
    %v128 = vmul.f32 %v115, %v44
    %v129 = vmul.f32 %v115, %v46
    %v130 = vmul.f32 %v115, %v48
    %v131 = vmul.f32 %v117, %v120
    %v132 = vmul.f32 %v117, %v121
    %v133 = vmul.f32 %v117, %v122
    %v134 = vmul.f32 %v117, %v124
    %v135 = vadd.f32 %v134, 1.0
    %v136 = vsub.f32 %v131, %v130
    %v137 = vadd.f32 %v132, %v129
    %v138 = vadd.f32 %v131, %v130
    %v139 = vmul.f32 %v117, %v126
    %v140 = vadd.f32 %v139, 1.0
    %v141 = vsub.f32 %v133, %v128
    %v142 = vsub.f32 %v132, %v129
    %v143 = vadd.f32 %v133, %v128
    %v144 = vmul.f32 %v117, %v127
    %v145 = vadd.f32 %v144, 1.0
    %v146 = vmul.f32 %v117, %v44
    %v147 = vmul.f32 %v117, %v46
    %v148 = vmul.f32 %v117, %v48
    %v149 = vmul.f32 %v119, %v120
    %v150 = vmul.f32 %v119, %v121
    %v151 = vmul.f32 %v119, %v122
    %v152 = vmul.f32 %v119, %v124
    %v153 = vadd.f32 %v152, 1.0
    %v154 = vsub.f32 %v149, %v148
    %v155 = vadd.f32 %v150, %v147
    %v156 = vadd.f32 %v149, %v148
    %v157 = vmul.f32 %v119, %v126
    %v158 = vadd.f32 %v157, 1.0
    %v159 = vsub.f32 %v151, %v146
    %v160 = vsub.f32 %v150, %v147
    %v161 = vadd.f32 %v151, %v146
    %v162 = vmul.f32 %v119, %v127
    %v163 = vadd.f32 %v162, 1.0
    %v164 = vmul.f32 %v153, %v50
    %v165 = vmul.f32 %v154, %v52
    %v166 = vadd.f32 %v164, %v165
    %v167 = vmul.f32 %v155, %v54
    %v168 = vadd.f32 %v166, %v167
    %v169 = vmul.f32 %v156, %v50
    %v170 = vmul.f32 %v158, %v52
    %v171 = vadd.f32 %v169, %v170
    %v172 = vmul.f32 %v159, %v54
    %v173 = vadd.f32 %v171, %v172
    %v174 = vmul.f32 %v160, %v50
    %v175 = vmul.f32 %v161, %v52
    %v176 = vadd.f32 %v174, %v175
    %v177 = vmul.f32 %v163, %v54
    %v178 = vadd.f32 %v176, %v177
    %v179 = vld [vmem:[#allocation5] sm:$0x1]
    %s180 = scalar_lea.vmem [#allocation5], 1
    %v181 = vld [vmem:[%s180] sm:$0x1]
    %s182 = scalar_lea.vmem [#allocation5], 2
    %v183 = vld [vmem:[%s182] sm:$0x1]
    %s184 = scalar_lea.vmem [#allocation5], 3
    %v185 = vld [vmem:[%s184] sm:$0x1]
    %v186 = vmul.f32 %v179, %v135
    %v187 = vmul.f32 %v181, %v138
    %v188 = vadd.f32 %v186, %v187
    %v189 = vmul.f32 %v183, %v142
    %v190 = vadd.f32 %v188, %v189
    %191 = vst [vmem:[#allocation7] sm:$0x1] %v190
    %v192 = vmul.f32 %v179, %v136
    %v193 = vmul.f32 %v181, %v140
    %v194 = vadd.f32 %v192, %v193
    %v195 = vmul.f32 %v183, %v143
    %v196 = vadd.f32 %v194, %v195
    %s197 = scalar_lea.vmem [#allocation7], 1
    %198 = vst [vmem:[%s197] sm:$0x1] %v196
    %v199 = vmul.f32 %v179, %v137
    %v200 = vmul.f32 %v181, %v141
    %v201 = vadd.f32 %v199, %v200
    %v202 = vmul.f32 %v183, %v145
    %v203 = vadd.f32 %v201, %v202
    %s204 = scalar_lea.vmem [#allocation7], 2
    %205 = vst [vmem:[%s204] sm:$0x1] %v203
    %v206 = vmul.f32 %v179, %v168
    %v207 = vmul.f32 %v181, %v173
    %v208 = vadd.f32 %v206, %v207
    %v209 = vmul.f32 %v183, %v178
    %v210 = vadd.f32 %v208, %v209
    %v211 = vadd.f32 %v210, %v185
    %s212 = scalar_lea.vmem [#allocation7], 3
    %213 = vst [vmem:[%s212] sm:$0x1] %v211
    %s214 = scalar_lea.vmem [#allocation5], 4
    %v215 = vld [vmem:[%s214] sm:$0x1]
    %s216 = scalar_lea.vmem [#allocation5], 5
    %v217 = vld [vmem:[%s216] sm:$0x1]
    %s218 = scalar_lea.vmem [#allocation5], 6
    %v219 = vld [vmem:[%s218] sm:$0x1]
    %s220 = scalar_lea.vmem [#allocation5], 7
    %v221 = vld [vmem:[%s220] sm:$0x1]
    %v222 = vmul.f32 %v215, %v135
    %v223 = vmul.f32 %v217, %v138
    %v224 = vadd.f32 %v222, %v223
    %v225 = vmul.f32 %v219, %v142
    %v226 = vadd.f32 %v224, %v225
    %s227 = scalar_lea.vmem [#allocation7], 4
    %228 = vst [vmem:[%s227] sm:$0x1] %v226
    %v229 = vmul.f32 %v215, %v136
    %v230 = vmul.f32 %v217, %v140
    %v231 = vadd.f32 %v229, %v230
    %v232 = vmul.f32 %v219, %v143
    %v233 = vadd.f32 %v231, %v232
    %s234 = scalar_lea.vmem [#allocation7], 5
    %235 = vst [vmem:[%s234] sm:$0x1] %v233
    %v236 = vmul.f32 %v215, %v137
    %v237 = vmul.f32 %v217, %v141
    %v238 = vadd.f32 %v236, %v237
    %v239 = vmul.f32 %v219, %v145
    %v240 = vadd.f32 %v238, %v239
    %s241 = scalar_lea.vmem [#allocation7], 6
    %242 = vst [vmem:[%s241] sm:$0x1] %v240
    %v243 = vmul.f32 %v215, %v168
    %v244 = vmul.f32 %v217, %v173
    %v245 = vadd.f32 %v243, %v244
    %v246 = vmul.f32 %v219, %v178
    %v247 = vadd.f32 %v245, %v246
    %v248 = vadd.f32 %v247, %v221
    %s249 = scalar_lea.vmem [#allocation7], 7
    %250 = vst [vmem:[%s249] sm:$0x1] %v248
    %s251 = scalar_lea.vmem [#allocation5], 8
    %v252 = vld [vmem:[%s251] sm:$0x1]
    %s253 = scalar_lea.vmem [#allocation5], 9
    %v254 = vld [vmem:[%s253] sm:$0x1]
    %s255 = scalar_lea.vmem [#allocation5], 10
    %v256 = vld [vmem:[%s255] sm:$0x1]
    %s257 = scalar_lea.vmem [#allocation5], 11
    %v258 = vld [vmem:[%s257] sm:$0x1]
    %v259 = vmul.f32 %v252, %v135
    %v260 = vmul.f32 %v254, %v138
    %v261 = vadd.f32 %v259, %v260
    %v262 = vmul.f32 %v256, %v142
    %v263 = vadd.f32 %v261, %v262
    %s264 = scalar_lea.vmem [#allocation7], 8
    %265 = vst [vmem:[%s264] sm:$0x1] %v263
    %v266 = vmul.f32 %v252, %v136
    %v267 = vmul.f32 %v254, %v140
    %v268 = vadd.f32 %v266, %v267
    %v269 = vmul.f32 %v256, %v143
    %v270 = vadd.f32 %v268, %v269
    %s271 = scalar_lea.vmem [#allocation7], 9
    %272 = vst [vmem:[%s271] sm:$0x1] %v270
    %v273 = vmul.f32 %v252, %v137
    %v274 = vmul.f32 %v254, %v141
    %v275 = vadd.f32 %v273, %v274
    %v276 = vmul.f32 %v256, %v145
    %v277 = vadd.f32 %v275, %v276
    %s278 = scalar_lea.vmem [#allocation7], 10
    %279 = vst [vmem:[%s278] sm:$0x1] %v277
    %v280 = vmul.f32 %v252, %v168
    %v281 = vmul.f32 %v254, %v173
    %v282 = vadd.f32 %v280, %v281
    %v283 = vmul.f32 %v256, %v178
    %v284 = vadd.f32 %v282, %v283
    %v285 = vadd.f32 %v284, %v258
    %s286 = scalar_lea.vmem [#allocation7], 11
    %287 = vst [vmem:[%s286] sm:$0x1] %v285
    // Predicated region
    $region18: #{tpu_custom_call.1} parent=1 // pred_check
      _
    $region19: #{tpu_custom_call.1} parent=1 // pred_check_branch
      %289 = sbr.rel (0) target = $region21
    $region20: #{tpu_custom_call.1} parent=1 // pred_region
      %291 = vsyncadd [#allocation4], 0
      %s292 = sshll.u32 [#allocation7], 4
      %s293 = int_to_ptr.vmem [resolvable:$true] %s292
      %s294 = sshll.u32 %s2, 4
      %s295 = int_to_ptr.hbm [resolvable:$true] %s294
      %300 = dma.vmem_to_hbm [thread:$0]  %s293, 192, %s295, [#allocation4], 16, 16, 1
    $region21: #{tpu_custom_call.1} parent=1 // pred_fallthru
      _
    // Predicated region
    $region22: #{tpu_custom_call.1} parent=1 // pred_check
      _
    $region23: #{tpu_custom_call.1} parent=1 // pred_check_branch
      %302 = sbr.rel (0) target = $region25
    $region24: #{tpu_custom_call.1} parent=1 // pred_region
      %304 = dma.done [#allocation4], 192
    $region25: #{tpu_custom_call.1} parent=1 // pred_fallthru
      _
    %305 = vsyncpa [#allocation3], 1
    %306 = vsyncpa [#allocation6], 1
    %307 = vsyncpa [#allocation4], 1

</llo_original>
